<compile_context>
chip_gen: v5e
topology: v5e:2x2
jax: 0.10.0
libtpu: 0.0.40
codegen_flags: <defaults>
</compile_context>

<pallas_src>
import functools

import jax
import jax.numpy as jnp
from jax.experimental import pallas as pl
from jax.experimental.pallas import tpu as pltpu

# BarrierLoss defaults
CLASSIFICATION_WEIGHT = 1.0
GRADIENT_WEIGHT = 1.0
SMOOTHNESS_WEIGHT = 0.1
MARGIN = 0.1
ALPHA_COEF = 0.1  # alpha_fn(b) = 0.1 * |b|


def barrier_loss_kernel(y_ref, xu_ref,
                        w1aug_ref, w1_ref, b1_ref, w2_ref, b2_ref, m_ref,
                        out_ref):
    """One batch tile.  Accumulates partial sums/counts into out_ref lanes 0..5:
       [safe_term_sum, unsafe_term_sum, grad_term_sum, smooth_sum, n_safe, n_unsafe]."""
    j = pl.program_id(1)

    @pl.when(j == 0)
    def _():
        out_ref[...] = jnp.zeros_like(out_ref)

    xu = xu_ref[...]            # (bb, D+U)   states ++ controls
    y = y_ref[...]              # (bb, 1)     1=safe, 0=unsafe, -1=padding

    # ---- barrier MLP forward:  B(x) = tanh(x @ W1^T + b1) @ w2^T + b2 ----
    # W1^T is zero-augmented over the control columns, so xu @ w1aug == x @ W1^T.
    z = jnp.dot(xu, w1aug_ref[...], preferred_element_type=jnp.float32) + b1_ref[...]  # (bb, H)
    h = jnp.tanh(z)
    w2 = w2_ref[...]                                                                   # (1, H)
    bvals = jnp.sum(h * w2, axis=1, keepdims=True) + b2_ref[...]                       # (bb, 1)

    # ---- analytic dB/dx (== torch.autograd.grad(B.sum(), x) for this MLP) ----
    dhid = (1.0 - h * h) * w2                                                          # (bb, H)
    grads = jnp.dot(dhid, w1_ref[...], preferred_element_type=jnp.float32)             # (bb, D)

    # ---- masks (padding rows have y = -1 and drop out of everything) ----
    safe_f = (y > 0.5).astype(jnp.float32)                                             # (bb, 1)
    unsafe_f = (jnp.abs(y) < 0.5).astype(jnp.float32)                                  # (bb, 1)
    valid_f = safe_f + unsafe_f

    # ---- classification terms ----
    safe_terms = jnp.maximum(MARGIN - bvals, 0.0)
    unsafe_terms = jnp.maximum(MARGIN + bvals, 0.0)

    # ---- Lie-derivative terms (fused dynamics: f(x,u) = [x,u] @ [A^T; Bm^T]) ----
    dyn = jnp.dot(xu, m_ref[...], preferred_element_type=jnp.float32)                  # (bb, D)
    lie = jnp.sum(grads * dyn, axis=1, keepdims=True)                                  # (bb, 1)
    alpha = ALPHA_COEF * jnp.abs(bvals)
    grad_terms = jnp.maximum(-alpha - lie, 0.0)

    # ---- smoothness terms ----
    sm = jnp.sum(grads * grads, axis=1, keepdims=True)                                 # (bb, 1)

    # ---- per-block partial reductions ----
    safe_sum = jnp.sum(safe_terms * safe_f)
    unsafe_sum = jnp.sum(unsafe_terms * unsafe_f)
    grad_sum = jnp.sum(grad_terms * safe_f)
    sm_sum = jnp.sum(sm * valid_f)
    n_safe = jnp.sum(safe_f)
    n_unsafe = jnp.sum(unsafe_f)

    lane = jax.lax.broadcasted_iota(jnp.int32, (1, 128), 1)
    partial = (jnp.where(lane == 0, safe_sum, 0.0)
               + jnp.where(lane == 1, unsafe_sum, 0.0)
               + jnp.where(lane == 2, grad_sum, 0.0)
               + jnp.where(lane == 3, sm_sum, 0.0)
               + jnp.where(lane == 4, n_safe, 0.0)
               + jnp.where(lane == 5, n_unsafe, 0.0))
    out_ref[...] += partial


def prepare_params(params):
    """Hoist weight transposes / reshapes / casts out of the per-step hot path."""
    W1, b1, w2, b2, A, Bm = params
    H, D = W1.shape
    U = Bm.shape[1]
    f32 = jnp.float32
    w1_aug = jnp.concatenate(
        [W1.T.astype(f32), jnp.zeros((U, H), f32)], axis=0)          # (D+U, H)
    m = jnp.concatenate([A.T.astype(f32), Bm.T.astype(f32)], axis=0)  # (D+U, D)
    return (w1_aug,
            W1.astype(f32).reshape(H, D),
            b1.astype(f32).reshape(1, H),
            w2.astype(f32).reshape(1, H),
            b2.astype(f32).reshape(1, 1),
            m)


def barrier_loss(states, labels, controls, prepared, *, block_b=256, num_splits=2):
    """Pallas-backed BarrierLoss forward.  Returns the same dict of scalars."""
    B, D = states.shape
    U = controls.shape[1]
    w1_aug, w1, b1, w2, b2, m = prepared
    H = w1.shape[0]
    DU = D + U

    # ---- tiling: batch blocks of bb rows, split across num_splits "cores" ----
    bb = int(min(block_b, ((B + 7) // 8) * 8))
    nb_total = -(-B // bb)                                 # ceil(B / bb)
    ns = num_splits if nb_total >= num_splits else 1
    nb = -(-nb_total // ns)                                # batch blocks per split
    B_pad = ns * nb * bb

    xu = jnp.concatenate([states.astype(jnp.float32),
                          controls.astype(jnp.float32)], axis=1)       # (B, D+U)
    y = labels.astype(jnp.float32).reshape(B, 1)
    if B_pad != B:
        xu = jnp.pad(xu, ((0, B_pad - B), (0, 0)))
        y = jnp.pad(y, ((0, B_pad - B), (0, 0)), constant_values=-1.0)  # pad rows invalid

    def batch_map(s, j):
        return (s * nb + j, 0)

    def const_map(s, j):
        return (0, 0)

    grid_spec = pltpu.PrefetchScalarGridSpec(
        num_scalar_prefetch=0,
        grid=(ns, nb),
        in_specs=[
            pl.BlockSpec((bb, 1), batch_map),      # labels
            pl.BlockSpec((bb, DU), batch_map),     # [states, controls]
            pl.BlockSpec((DU, H), const_map),      # zero-augmented W1^T
            pl.BlockSpec((H, D), const_map),       # W1
            pl.BlockSpec((1, H), const_map),       # b1
            pl.BlockSpec((1, H), const_map),       # w2
            pl.BlockSpec((1, 1), const_map),       # b2
            pl.BlockSpec((DU, D), const_map),      # [A^T; Bm^T]
        ],
        out_specs=pl.BlockSpec((1, 128), lambda s, j: (s, 0)),
    )

    out = pl.pallas_call(
        barrier_loss_kernel,
        out_shape=jax.ShapeDtypeStruct((ns, 128), jnp.float32),
        grid_spec=grid_spec,
        compiler_params=pltpu.CompilerParams(
            dimension_semantics=("parallel", "arbitrary")),
    )(y, xu, w1_aug, w1, b1, w2, b2, m)

    # ---- tiny finalize in JAX: combine per-split partials, do the masked means ----
    sums = jnp.sum(out, axis=0)                    # (128,)
    safe_sum, unsafe_sum = sums[0], sums[1]
    grad_sum, sm_sum = sums[2], sums[3]
    n_safe, n_unsafe = sums[4], sums[5]

    safe_loss = jnp.where(n_safe > 0.0, safe_sum / jnp.maximum(n_safe, 1.0), 0.0)
    unsafe_loss = jnp.where(n_unsafe > 0.0, unsafe_sum / jnp.maximum(n_unsafe, 1.0), 0.0)
    classification_loss = safe_loss + unsafe_loss
    gradient_loss = jnp.where(n_safe > 0.0, grad_sum / jnp.maximum(n_safe, 1.0), 0.0)
    smoothness_loss = sm_sum / jnp.float32(B)      # mean over ALL real states
    total = (CLASSIFICATION_WEIGHT * classification_loss
             + GRADIENT_WEIGHT * gradient_loss
             + SMOOTHNESS_WEIGHT * smoothness_loss)
    return {
        "total_loss": total,
        "classification_loss": classification_loss,
        "gradient_loss": gradient_loss,
        "smoothness_loss": smoothness_loss,
        "safe_loss": safe_loss,
        "unsafe_loss": unsafe_loss,
    }


# ---------------- pure-JAX reference (mirrors the PyTorch forward) ----------------
def reference_loss(states, labels, controls, params):
    W1, b1, w2, b2, A, Bm = params

    def barrier_scalar(x):                       # x: (D,)
        h = jnp.tanh(W1 @ x + b1)
        return jnp.dot(w2[0], h) + b2[0]

    bvals = jax.vmap(barrier_scalar)(states)[:, None]                  # (B, 1)
    grads = jax.vmap(jax.grad(barrier_scalar))(states)                 # (B, D)

    safe = labels[:, 0] > 0.5
    unsafe = ~safe
    safe_loss = jnp.where(
        safe.any(), jnp.sum(jnp.maximum(MARGIN - bvals[:, 0], 0.0) * safe)
        / jnp.maximum(safe.sum(), 1), 0.0)
    unsafe_loss = jnp.where(
        unsafe.any(), jnp.sum(jnp.maximum(MARGIN + bvals[:, 0], 0.0) * unsafe)
        / jnp.maximum(unsafe.sum(), 1), 0.0)
    classification_loss = safe_loss + unsafe_loss

    dyn = states @ A.T + controls @ Bm.T
    lie = jnp.sum(grads * dyn, axis=1)
    alpha = ALPHA_COEF * jnp.abs(bvals[:, 0])
    gradient_loss = jnp.where(
        safe.any(), jnp.sum(jnp.maximum(-alpha - lie, 0.0) * safe)
        / jnp.maximum(safe.sum(), 1), 0.0)

    smoothness_loss = jnp.mean(jnp.sum(grads ** 2, axis=1))
    total = (CLASSIFICATION_WEIGHT * classification_loss
             + GRADIENT_WEIGHT * gradient_loss
             + SMOOTHNESS_WEIGHT * smoothness_loss)
    return {
        "total_loss": total,
        "classification_loss": classification_loss,
        "gradient_loss": gradient_loss,
        "smoothness_loss": smoothness_loss,
        "safe_loss": safe_loss,
        "unsafe_loss": unsafe_loss,
    }


if __name__ == "__main__":
    D, U, H = 4, 2, 32
    key = jax.random.PRNGKey(0)
    k_x, k_u, k_w1, k_b1, k_w2, k_bm, k_x2, k_u2, k_y2 = jax.random.split(key, 9)

    # Deterministic barrier-network parameters (2-layer MLP, hidden=32)
    W1 = 0.5 * jax.random.normal(k_w1, (H, D), jnp.float32)
    b1 = 0.1 * jax.random.normal(k_b1, (H,), jnp.float32)
    w2 = 0.5 * jax.random.normal(k_w2, (1, H), jnp.float32)
    b2 = jnp.zeros((1,), jnp.float32)
    # Deterministic linear dynamics f(x, u) = A x + Bm u
    A = -jnp.eye(D, dtype=jnp.float32)
    Bm = 0.5 * jax.random.normal(k_bm, (D, U), jnp.float32)

    params = (W1, b1, w2, b2, A, Bm)
    prepared = prepare_params(params)   # cached outside the hot path

    def check(name, got, ref, tol=2e-4):
        for k in ref:
            g, r = float(got[k]), float(ref[k])
            assert abs(g - r) < tol + tol * abs(r), (name, k, g, r)

    # ---- small test (single block, single split) ----
    B = 8
    states = jax.random.normal(k_x, (B, D), jnp.float32)
    labels = jnp.array([[1.0], [0.0], [1.0], [0.0], [1.0], [1.0], [0.0], [1.0]],
                       dtype=jnp.float32)        # 1 = safe, 0 = unsafe
    controls = jax.random.normal(k_u, (B, U), jnp.float32)

    losses = barrier_loss(states, labels, controls, prepared)
    jax.block_until_ready(losses)
    check("small", losses, reference_loss(states, labels, controls, params))

    # ---- larger test: exercises batch tiling, 2-way split, and padding (B not /8-split) ----
    B2 = 1000
    states2 = jax.random.normal(k_x2, (B2, D), jnp.float32)
    controls2 = jax.random.normal(k_u2, (B2, U), jnp.float32)
    labels2 = (jax.random.uniform(k_y2, (B2, 1)) > 0.4).astype(jnp.float32)

    losses2 = barrier_loss(states2, labels2, controls2, prepared,
                           block_b=128, num_splits=2)
    jax.block_until_ready(losses2)
    check("large", losses2, reference_loss(states2, labels2, controls2, params))

    print("KERNEL_OK")
</pallas_src>

<mosaic_0001>
module attributes {stable_mosaic.version = 11 : i64} {
  func.func @barrier_loss_kernel(%arg0: i32, %arg1: i32, %arg2: memref<8x1xf32, #tpu.memory_space<vmem>>, %arg3: memref<8x6xf32, #tpu.memory_space<vmem>>, %arg4: memref<6x32xf32, #tpu.memory_space<vmem>>, %arg5: memref<32x4xf32, #tpu.memory_space<vmem>>, %arg6: memref<1x32xf32, #tpu.memory_space<vmem>>, %arg7: memref<1x32xf32, #tpu.memory_space<vmem>>, %arg8: memref<1x1xf32, #tpu.memory_space<vmem>>, %arg9: memref<6x4xf32, #tpu.memory_space<vmem>>, %arg10: memref<1x128xf32, #tpu.memory_space<vmem>>) attributes {dimension_semantics = [#tpu.dimension_semantics<parallel>, #tpu.dimension_semantics<arbitrary>], iteration_bounds = array<i64: 1, 1>, scalar_prefetch = 0 : i64, scratch_operands = 0 : i64, tpu.core_type = #tpu.core_type<tc>, window_params = [{transform_indices = @transform_0, window_bounds = array<i64: 8, 1>}, {transform_indices = @transform_1, window_bounds = array<i64: 8, 6>}, {pipeline_mode = #tpu.pipeline_mode<synchronous>, transform_indices = @transform_2, window_bounds = array<i64: 6, 32>}, {pipeline_mode = #tpu.pipeline_mode<synchronous>, transform_indices = @transform_3, window_bounds = array<i64: 32, 4>}, {pipeline_mode = #tpu.pipeline_mode<synchronous>, transform_indices = @transform_4, window_bounds = array<i64: 1, 32>}, {pipeline_mode = #tpu.pipeline_mode<synchronous>, transform_indices = @transform_5, window_bounds = array<i64: 1, 32>}, {pipeline_mode = #tpu.pipeline_mode<synchronous>, transform_indices = @transform_6, window_bounds = array<i64: 1, 1>}, {pipeline_mode = #tpu.pipeline_mode<synchronous>, transform_indices = @transform_7, window_bounds = array<i64: 6, 4>}, {transform_indices = @transform_8, window_bounds = array<i64: 1, 128>}]} {
    %c0_i32 = arith.constant 0 : i32
    %0 = arith.cmpi eq, %arg1, %c0_i32 : i32
    %1 = arith.extui %0 : i1 to i32
    %c0_i32_0 = arith.constant 0 : i32
    %2 = arith.cmpi ne, %1, %c0_i32_0 : i32
    scf.if %2 {
      %cst_48 = arith.constant 0.000000e+00 : f32
      %127 = vector.broadcast %cst_48 : f32 to vector<1x128xf32>
      %c0_49 = arith.constant 0 : index
      %c0_50 = arith.constant 0 : index
      %128 = vector.load %arg10[%c0_49, %c0_50] : memref<1x128xf32, #tpu.memory_space<vmem>>, vector<1x128xf32>
      tpu.vector_store %arg10[%c0_49, %c0_50], %127 {strides = array<i32>} : memref<1x128xf32, #tpu.memory_space<vmem>>, vector<1x128xf32>,
    } else {
    }
    %c0 = arith.constant 0 : index
    %c0_1 = arith.constant 0 : index
    %3 = vector.load %arg3[%c0, %c0_1] : memref<8x6xf32, #tpu.memory_space<vmem>>, vector<8x6xf32>
    %c0_2 = arith.constant 0 : index
    %c0_3 = arith.constant 0 : index
    %4 = vector.load %arg2[%c0_2, %c0_3] : memref<8x1xf32, #tpu.memory_space<vmem>>, vector<8x1xf32>
    %c0_4 = arith.constant 0 : index
    %c0_5 = arith.constant 0 : index
    %5 = vector.load %arg4[%c0_4, %c0_5] : memref<6x32xf32, #tpu.memory_space<vmem>>, vector<6x32xf32>
    %cst = arith.constant dense<0.000000e+00> : vector<8x32xf32>
    %6 = tpu.matmul %3, %5, %cst {dimension_numbers = #tpu.dot_dimension_numbers<[1], [0], [0], [1], [0, 0, 1, 1], [], []>} : vector<8x6xf32>, vector<6x32xf32>, vector<8x32xf32> -> vector<8x32xf32>
    %c0_6 = arith.constant 0 : index
    %c0_7 = arith.constant 0 : index
    %7 = vector.load %arg6[%c0_6, %c0_7] : memref<1x32xf32, #tpu.memory_space<vmem>>, vector<1x32xf32>
    %8 = vector.broadcast %7 : vector<1x32xf32> to vector<8x32xf32>
    %9 = arith.addf %6, %8 : vector<8x32xf32>
    %10 = math.tanh %9 : vector<8x32xf32>
    %c0_8 = arith.constant 0 : index
    %c0_9 = arith.constant 0 : index
    %11 = vector.load %arg7[%c0_8, %c0_9] : memref<1x32xf32, #tpu.memory_space<vmem>>, vector<1x32xf32>
    %12 = vector.broadcast %11 : vector<1x32xf32> to vector<8x32xf32>
    %13 = arith.mulf %10, %12 : vector<8x32xf32>
    %cst_10 = arith.constant dense<0.000000e+00> : vector<8xf32>
    %14 = vector.multi_reduction <add>, %13, %cst_10 [1] : vector<8x32xf32> to vector<8xf32>
    %15 = vector.shape_cast %14 : vector<8xf32> to vector<8x1xf32>
    %c0_11 = arith.constant 0 : index
    %c0_12 = arith.constant 0 : index
    %16 = vector.load %arg8[%c0_11, %c0_12] : memref<1x1xf32, #tpu.memory_space<vmem>>, vector<1x1xf32>
    %17 = vector.broadcast %16 : vector<1x1xf32> to vector<8x1xf32>
    %18 = arith.addf %15, %17 : vector<8x1xf32>
    %19 = arith.mulf %10, %10 : vector<8x32xf32>
    %cst_13 = arith.constant 1.000000e+00 : f32
    %20 = vector.broadcast %cst_13 : f32 to vector<8x32xf32>
    %21 = arith.subf %20, %19 : vector<8x32xf32>
    %22 = vector.broadcast %11 : vector<1x32xf32> to vector<8x32xf32>
    %23 = arith.mulf %21, %22 : vector<8x32xf32>
    %c0_14 = arith.constant 0 : index
    %c0_15 = arith.constant 0 : index
    %24 = vector.load %arg5[%c0_14, %c0_15] : memref<32x4xf32, #tpu.memory_space<vmem>>, vector<32x4xf32>
    %cst_16 = arith.constant dense<0.000000e+00> : vector<8x4xf32>
    %25 = tpu.matmul %23, %24, %cst_16 {dimension_numbers = #tpu.dot_dimension_numbers<[1], [0], [0], [1], [0, 0, 1, 1], [], []>} : vector<8x32xf32>, vector<32x4xf32>, vector<8x4xf32> -> vector<8x4xf32>
    %cst_17 = arith.constant 5.000000e-01 : f32
    %26 = vector.broadcast %cst_17 : f32 to vector<8x1xf32>
    %27 = arith.cmpf ogt, %4, %26 : vector<8x1xf32>
    %28 = arith.extui %27 : vector<8x1xi1> to vector<8x1xi32>
    %29 = arith.sitofp %28 : vector<8x1xi32> to vector<8x1xf32>
    %30 = math.absf %4 : vector<8x1xf32>
    %cst_18 = arith.constant 5.000000e-01 : f32
    %31 = vector.broadcast %cst_18 : f32 to vector<8x1xf32>
    %32 = arith.cmpf olt, %30, %31 : vector<8x1xf32>
    %33 = arith.extui %32 : vector<8x1xi1> to vector<8x1xi32>
    %34 = arith.sitofp %33 : vector<8x1xi32> to vector<8x1xf32>
    %35 = arith.addf %29, %34 : vector<8x1xf32>
    %cst_19 = arith.constant 1.000000e-01 : f32
    %36 = vector.broadcast %cst_19 : f32 to vector<8x1xf32>
    %37 = arith.subf %36, %18 : vector<8x1xf32>
    %cst_20 = arith.constant 0.000000e+00 : f32
    %38 = vector.broadcast %cst_20 : f32 to vector<8x1xf32>
    %39 = arith.maximumf %37, %38 : vector<8x1xf32>
    %cst_21 = arith.constant 1.000000e-01 : f32
    %40 = vector.broadcast %cst_21 : f32 to vector<8x1xf32>
    %41 = arith.addf %40, %18 : vector<8x1xf32>
    %cst_22 = arith.constant 0.000000e+00 : f32
    %42 = vector.broadcast %cst_22 : f32 to vector<8x1xf32>
    %43 = arith.maximumf %41, %42 : vector<8x1xf32>
    %c0_23 = arith.constant 0 : index
    %c0_24 = arith.constant 0 : index
    %44 = vector.load %arg9[%c0_23, %c0_24] : memref<6x4xf32, #tpu.memory_space<vmem>>, vector<6x4xf32>
    %cst_25 = arith.constant dense<0.000000e+00> : vector<8x4xf32>
    %45 = tpu.matmul %3, %44, %cst_25 {dimension_numbers = #tpu.dot_dimension_numbers<[1], [0], [0], [1], [0, 0, 1, 1], [], []>} : vector<8x6xf32>, vector<6x4xf32>, vector<8x4xf32> -> vector<8x4xf32>
    %46 = arith.mulf %25, %45 : vector<8x4xf32>
    %cst_26 = arith.constant dense<0.000000e+00> : vector<8xf32>
    %47 = vector.multi_reduction <add>, %46, %cst_26 [1] : vector<8x4xf32> to vector<8xf32>
    %48 = vector.shape_cast %47 : vector<8xf32> to vector<8x1xf32>
    %49 = math.absf %18 : vector<8x1xf32>
    %cst_27 = arith.constant 1.000000e-01 : f32
    %50 = vector.broadcast %cst_27 : f32 to vector<8x1xf32>
    %51 = arith.mulf %50, %49 : vector<8x1xf32>
    %cst_28 = arith.constant 0.000000e+00 : f32
    %52 = vector.broadcast %cst_28 : f32 to vector<8x1xf32>
    %53 = arith.subf %52, %51 : vector<8x1xf32>
    %54 = arith.subf %53, %48 : vector<8x1xf32>
    %cst_29 = arith.constant 0.000000e+00 : f32
    %55 = vector.broadcast %cst_29 : f32 to vector<8x1xf32>
    %56 = arith.maximumf %54, %55 : vector<8x1xf32>
    %57 = arith.mulf %25, %25 : vector<8x4xf32>
    %cst_30 = arith.constant dense<0.000000e+00> : vector<8xf32>
    %58 = vector.multi_reduction <add>, %57, %cst_30 [1] : vector<8x4xf32> to vector<8xf32>
    %59 = vector.shape_cast %58 : vector<8xf32> to vector<8x1xf32>
    %60 = arith.mulf %39, %29 : vector<8x1xf32>
    %61 = vector.shape_cast %60 : vector<8x1xf32> to vector<1x8x1xf32>
    %cst_31 = arith.constant dense<0.000000e+00> : vector<1xf32>
    %62 = vector.multi_reduction <add>, %61, %cst_31 [1, 2] : vector<1x8x1xf32> to vector<1xf32>
    %63 = vector.shape_cast %62 : vector<1xf32> to vector<1x1x1xf32>
    %64 = vector.extract %63[0, 0, 0] : f32 from vector<1x1x1xf32>
    %65 = arith.mulf %43, %34 : vector<8x1xf32>
    %66 = vector.shape_cast %65 : vector<8x1xf32> to vector<1x8x1xf32>
    %cst_32 = arith.constant dense<0.000000e+00> : vector<1xf32>
    %67 = vector.multi_reduction <add>, %66, %cst_32 [1, 2] : vector<1x8x1xf32> to vector<1xf32>
    %68 = vector.shape_cast %67 : vector<1xf32> to vector<1x1x1xf32>
    %69 = vector.extract %68[0, 0, 0] : f32 from vector<1x1x1xf32>
    %70 = arith.mulf %56, %29 : vector<8x1xf32>
    %71 = vector.shape_cast %70 : vector<8x1xf32> to vector<1x8x1xf32>
    %cst_33 = arith.constant dense<0.000000e+00> : vector<1xf32>
    %72 = vector.multi_reduction <add>, %71, %cst_33 [1, 2] : vector<1x8x1xf32> to vector<1xf32>
    %73 = vector.shape_cast %72 : vector<1xf32> to vector<1x1x1xf32>
    %74 = vector.extract %73[0, 0, 0] : f32 from vector<1x1x1xf32>
    %75 = arith.mulf %59, %35 : vector<8x1xf32>
    %76 = vector.shape_cast %75 : vector<8x1xf32> to vector<1x8x1xf32>
    %cst_34 = arith.constant dense<0.000000e+00> : vector<1xf32>
    %77 = vector.multi_reduction <add>, %76, %cst_34 [1, 2] : vector<1x8x1xf32> to vector<1xf32>
    %78 = vector.shape_cast %77 : vector<1xf32> to vector<1x1x1xf32>
    %79 = vector.extract %78[0, 0, 0] : f32 from vector<1x1x1xf32>
    %80 = vector.shape_cast %29 : vector<8x1xf32> to vector<1x8x1xf32>
    %cst_35 = arith.constant dense<0.000000e+00> : vector<1xf32>
    %81 = vector.multi_reduction <add>, %80, %cst_35 [1, 2] : vector<1x8x1xf32> to vector<1xf32>
    %82 = vector.shape_cast %81 : vector<1xf32> to vector<1x1x1xf32>
    %83 = vector.extract %82[0, 0, 0] : f32 from vector<1x1x1xf32>
    %84 = vector.shape_cast %34 : vector<8x1xf32> to vector<1x8x1xf32>
    %cst_36 = arith.constant dense<0.000000e+00> : vector<1xf32>
    %85 = vector.multi_reduction <add>, %84, %cst_36 [1, 2] : vector<1x8x1xf32> to vector<1xf32>
    %86 = vector.shape_cast %85 : vector<1xf32> to vector<1x1x1xf32>
    %87 = vector.extract %86[0, 0, 0] : f32 from vector<1x1x1xf32>
    %88 = tpu.iota {dimensions = array<i32: 1>} : vector<1x128xi32>
    %c0_i32_37 = arith.constant 0 : i32
    %89 = vector.broadcast %c0_i32_37 : i32 to vector<1x128xi32>
    %90 = arith.cmpi eq, %88, %89 : vector<1x128xi32>
    %cst_38 = arith.constant 0.000000e+00 : f32
    %91 = vector.broadcast %64 : f32 to vector<1x128xf32>
    %92 = vector.broadcast %cst_38 : f32 to vector<1x128xf32>
    %93 = arith.select %90, %91, %92 : vector<1x128xi1>, vector<1x128xf32>
    %c1_i32 = arith.constant 1 : i32
    %94 = vector.broadcast %c1_i32 : i32 to vector<1x128xi32>
    %95 = arith.cmpi eq, %88, %94 : vector<1x128xi32>
    %cst_39 = arith.constant 0.000000e+00 : f32
    %96 = vector.broadcast %69 : f32 to vector<1x128xf32>
    %97 = vector.broadcast %cst_39 : f32 to vector<1x128xf32>
    %98 = arith.select %95, %96, %97 : vector<1x128xi1>, vector<1x128xf32>
    %99 = arith.addf %93, %98 : vector<1x128xf32>
    %c2_i32 = arith.constant 2 : i32
    %100 = vector.broadcast %c2_i32 : i32 to vector<1x128xi32>
    %101 = arith.cmpi eq, %88, %100 : vector<1x128xi32>
    %cst_40 = arith.constant 0.000000e+00 : f32
    %102 = vector.broadcast %74 : f32 to vector<1x128xf32>
    %103 = vector.broadcast %cst_40 : f32 to vector<1x128xf32>
    %104 = arith.select %101, %102, %103 : vector<1x128xi1>, vector<1x128xf32>
    %105 = arith.addf %99, %104 : vector<1x128xf32>
    %c3_i32 = arith.constant 3 : i32
    %106 = vector.broadcast %c3_i32 : i32 to vector<1x128xi32>
    %107 = arith.cmpi eq, %88, %106 : vector<1x128xi32>
    %cst_41 = arith.constant 0.000000e+00 : f32
    %108 = vector.broadcast %79 : f32 to vector<1x128xf32>
    %109 = vector.broadcast %cst_41 : f32 to vector<1x128xf32>
    %110 = arith.select %107, %108, %109 : vector<1x128xi1>, vector<1x128xf32>
    %111 = arith.addf %105, %110 : vector<1x128xf32>
    %c4_i32 = arith.constant 4 : i32
    %112 = vector.broadcast %c4_i32 : i32 to vector<1x128xi32>
    %113 = arith.cmpi eq, %88, %112 : vector<1x128xi32>
    %cst_42 = arith.constant 0.000000e+00 : f32
    %114 = vector.broadcast %83 : f32 to vector<1x128xf32>
    %115 = vector.broadcast %cst_42 : f32 to vector<1x128xf32>
    %116 = arith.select %113, %114, %115 : vector<1x128xi1>, vector<1x128xf32>
    %117 = arith.addf %111, %116 : vector<1x128xf32>
    %c5_i32 = arith.constant 5 : i32
    %118 = vector.broadcast %c5_i32 : i32 to vector<1x128xi32>
    %119 = arith.cmpi eq, %88, %118 : vector<1x128xi32>
    %cst_43 = arith.constant 0.000000e+00 : f32
    %120 = vector.broadcast %87 : f32 to vector<1x128xf32>
    %121 = vector.broadcast %cst_43 : f32 to vector<1x128xf32>
    %122 = arith.select %119, %120, %121 : vector<1x128xi1>, vector<1x128xf32>
    %123 = arith.addf %117, %122 : vector<1x128xf32>
    %c0_44 = arith.constant 0 : index
    %c0_45 = arith.constant 0 : index
    %124 = vector.load %arg10[%c0_44, %c0_45] : memref<1x128xf32, #tpu.memory_space<vmem>>, vector<1x128xf32>
    %125 = arith.addf %124, %123 : vector<1x128xf32>
    %c0_46 = arith.constant 0 : index
    %c0_47 = arith.constant 0 : index
    %126 = vector.load %arg10[%c0_46, %c0_47] : memref<1x128xf32, #tpu.memory_space<vmem>>, vector<1x128xf32>
    tpu.vector_store %arg10[%c0_46, %c0_47], %125 {strides = array<i32>} : memref<1x128xf32, #tpu.memory_space<vmem>>, vector<1x128xf32>,
    return
  }
  func.func @transform_0(%arg0: i32, %arg1: i32) -> (i32, i32) {
    %c1_i32 = arith.constant 1 : i32
    %0 = arith.muli %arg0, %c1_i32 : i32
    %1 = arith.addi %0, %arg1 : i32
    %c0_i32 = arith.constant 0 : i32
    %c0_i32_0 = arith.constant 0 : i32
    return %1, %c0_i32 : i32, i32
  }
  func.func @transform_1(%arg0: i32, %arg1: i32) -> (i32, i32) {
    %c1_i32 = arith.constant 1 : i32
    %0 = arith.muli %arg0, %c1_i32 : i32
    %1 = arith.addi %0, %arg1 : i32
    %c0_i32 = arith.constant 0 : i32
    %c0_i32_0 = arith.constant 0 : i32
    return %1, %c0_i32 : i32, i32
  }
  func.func @transform_2(%arg0: i32, %arg1: i32) -> (i32, i32) {
    %c0_i32 = arith.constant 0 : i32
    %c0_i32_0 = arith.constant 0 : i32
    %c0_i32_1 = arith.constant 0 : i32
    return %c0_i32, %c0_i32_0 : i32, i32
  }
  func.func @transform_3(%arg0: i32, %arg1: i32) -> (i32, i32) {
    %c0_i32 = arith.constant 0 : i32
    %c0_i32_0 = arith.constant 0 : i32
    %c0_i32_1 = arith.constant 0 : i32
    return %c0_i32, %c0_i32_0 : i32, i32
  }
  func.func @transform_4(%arg0: i32, %arg1: i32) -> (i32, i32) {
    %c0_i32 = arith.constant 0 : i32
    %c0_i32_0 = arith.constant 0 : i32
    %c0_i32_1 = arith.constant 0 : i32
    return %c0_i32, %c0_i32_0 : i32, i32
  }
  func.func @transform_5(%arg0: i32, %arg1: i32) -> (i32, i32) {
    %c0_i32 = arith.constant 0 : i32
    %c0_i32_0 = arith.constant 0 : i32
    %c0_i32_1 = arith.constant 0 : i32
    return %c0_i32, %c0_i32_0 : i32, i32
  }
  func.func @transform_6(%arg0: i32, %arg1: i32) -> (i32, i32) {
    %c0_i32 = arith.constant 0 : i32
    %c0_i32_0 = arith.constant 0 : i32
    %c0_i32_1 = arith.constant 0 : i32
    return %c0_i32, %c0_i32_0 : i32, i32
  }
  func.func @transform_7(%arg0: i32, %arg1: i32) -> (i32, i32) {
    %c0_i32 = arith.constant 0 : i32
    %c0_i32_0 = arith.constant 0 : i32
    %c0_i32_1 = arith.constant 0 : i32
    return %c0_i32, %c0_i32_0 : i32, i32
  }
  func.func @transform_8(%arg0: i32, %arg1: i32) -> (i32, i32) {
    %c0_i32 = arith.constant 0 : i32
    %c0_i32_0 = arith.constant 0 : i32
    return %arg0, %c0_i32 : i32, i32
  }
}

</mosaic_0001>

<llo_original>
// kernel: tpu_custom_call.1
$region0: #{tpu_custom_call.1}
  #allocation0 [shape = 'u32[]', space=smem, size = 0x4, offset = 0x4, fixed_abs, tag = 'smem constant byte address 0x4 - core index']
  #allocation1 [shape = 'u32[72,128]{1,0:T(1,128)}', space=vmem, size = 0x9000, scoped, tag = 'internal scratch']
  #allocation2 [shape = 'f32[1,1]{1,0:T(1,128)S(1)}', space=vmem, size = 0x200, scoped, tag = 'scoped memory for tpu_custom_call.1']
  %s0 = inlined_call_operand.vmem [shape: f32[8,1], index: 0, kind: input, shape index: {}]
  %s1 = inlined_call_operand.vmem [shape: f32[8,6], index: 1, kind: input, shape index: {}]
  %s2 = inlined_call_operand.vmem [shape: f32[6,32], index: 2, kind: input, shape index: {}]
  %s3 = inlined_call_operand.vmem [shape: f32[32,4], index: 3, kind: input, shape index: {}]
  %s4 = inlined_call_operand.vmem [shape: f32[1,32], index: 4, kind: input, shape index: {}]
  %s5 = inlined_call_operand.vmem [shape: f32[1,32], index: 5, kind: input, shape index: {}]
  %s6 = inlined_call_operand.<no memory space> [shape: f32[1,1], index: 6, kind: input, shape index: {}]
  %s7 = inlined_call_operand.vmem [shape: f32[6,4], index: 7, kind: input, shape index: {}]
  %s8 = inlined_call_operand.hbm [shape: f32[1,128], index: 8, kind: output, shape index: {}]
  %s9 = sld [smem:[#allocation0]]
  $region46: #{tpu_custom_call.1} parent=0
    _
  %s11 = ssub.s32 1, %s9
  %s12 = scalar_select 0, %s11, %s9
  %v13 = vstv %s6
  %14 = vst [vmem:[#allocation2] sm:$0x1] %v13
  $region1: #{tpu_custom_call.1} parent=0
    #allocation3 [shape = 'u8[512]{0}', space=vmem, size = 0x400, scoped, tag = 'output window, operand 0, single buffered']
    #allocation4 [shape = 's32[1]{0}', space=sflag, size = 0x4, scoped, tag = 'scoped memory for tpu_custom_call.1']
    %15 = vsyncpa [#allocation4], 0
    // Predicated region
    $region2: #{tpu_custom_call.1} parent=1 // pred_check
      _
    $region3: #{tpu_custom_call.1} parent=1 // pred_check_branch
      %17 = sbr.rel (0) target = $region5
    $region4: #{tpu_custom_call.1} parent=1 // pred_region
      %s18 = sadd.s32 0, 0
      %p19 = scmp.lt.s32.totalorder %s18, 0
      %s20 = scalar_select %p19, %s18, 0
      %s21 = smul.addr %s20, 8
      %s22 = scalar_lea.vmem %s0, %s21
      %s23 = sadd.s32 0, 0
    $region5: #{tpu_custom_call.1} parent=1 // pred_fallthru
      _
    // Predicated region
    $region6: #{tpu_custom_call.1} parent=1 // pred_check
      _
    $region7: #{tpu_custom_call.1} parent=1 // pred_check_branch
      %25 = sbr.rel (0) target = $region9
    $region8: #{tpu_custom_call.1} parent=1 // pred_region
      %s26 = sadd.s32 0, 0
      %p27 = scmp.lt.s32.totalorder %s26, 0
      %s28 = scalar_select %p27, %s26, 0
      %s29 = smul.addr %s28, 8
      %s30 = scalar_lea.vmem %s1, %s29
      %s31 = sadd.s32 0, 0
    $region9: #{tpu_custom_call.1} parent=1 // pred_fallthru
      _
    // Predicated region
    $region10: #{tpu_custom_call.1} parent=1 // pred_check
      _
    $region11: #{tpu_custom_call.1} parent=1 // pred_check_branch
      %33 = sbr.rel (0) target = $region13
    $region12: #{tpu_custom_call.1} parent=1 // pred_region
      _
    $region13: #{tpu_custom_call.1} parent=1 // pred_fallthru
      _
    // Predicated region
    $region14: #{tpu_custom_call.1} parent=1 // pred_check
      _
    $region15: #{tpu_custom_call.1} parent=1 // pred_check_branch
      %35 = sbr.rel (0) target = $region17
    $region16: #{tpu_custom_call.1} parent=1 // pred_region
      _
    $region17: #{tpu_custom_call.1} parent=1 // pred_fallthru
      _
    // Predicated region
    $region18: #{tpu_custom_call.1} parent=1 // pred_check
      _
    $region19: #{tpu_custom_call.1} parent=1 // pred_check_branch
      %37 = sbr.rel (0) target = $region21
    $region20: #{tpu_custom_call.1} parent=1 // pred_region
      _
    $region21: #{tpu_custom_call.1} parent=1 // pred_fallthru
      _
    // Predicated region
    $region22: #{tpu_custom_call.1} parent=1 // pred_check
      _
    $region23: #{tpu_custom_call.1} parent=1 // pred_check_branch
      %39 = sbr.rel (0) target = $region25
    $region24: #{tpu_custom_call.1} parent=1 // pred_region
      _
    $region25: #{tpu_custom_call.1} parent=1 // pred_fallthru
      _
    // Predicated region
    $region26: #{tpu_custom_call.1} parent=1 // pred_check
      _
    $region27: #{tpu_custom_call.1} parent=1 // pred_check_branch
      %41 = sbr.rel (0) target = $region29
    $region28: #{tpu_custom_call.1} parent=1 // pred_region
      _
    $region29: #{tpu_custom_call.1} parent=1 // pred_fallthru
      _
    // Predicated region
    $region30: #{tpu_custom_call.1} parent=1 // pred_check
      _
    $region31: #{tpu_custom_call.1} parent=1 // pred_check_branch
      %43 = sbr.rel (0) target = $region33
    $region32: #{tpu_custom_call.1} parent=1 // pred_region
      _
    $region33: #{tpu_custom_call.1} parent=1 // pred_fallthru
      _
    %s44 = sadd.s32 0, 0
    %p45 = scmp.lt.s32.totalorder %s44, 0
    %s46 = scalar_select %p45, %s44, 0
    %s47 = smul.addr %s46, 8
    %s48 = scalar_lea.vmem %s0, %s47
    %s49 = sadd.s32 0, 0
    %p50 = scmp.lt.s32.totalorder %s49, 0
    %s51 = scalar_select %p50, %s49, 0
    %s52 = smul.addr %s51, 8
    %s53 = scalar_lea.vmem %s1, %s52
    %s54 = sadd.s32 0, 0
    %p55 = scmp.lt.s32.totalorder %s54, 0
    %s56 = scalar_select %p55, %s54, 0
    %s57 = smul.addr %s56, 8
    %s58 = scalar_lea.vmem %s0, %s57
    %s59 = sadd.s32 0, 0
    %s60 = sadd.s32 0, 0
    %p61 = scmp.lt.s32.totalorder %s60, 0
    %s62 = scalar_select %p61, %s60, 0
    %s63 = smul.addr %s62, 8
    %s64 = scalar_lea.vmem %s1, %s63
    %s65 = sadd.s32 0, 0
    %p66 = scmp.eq.s32.totalorder 0, 0
    // Predicated region
    $region34: #{tpu_custom_call.1} parent=1 // pred_check
      %p67 = pneg %p66
    $region35: #{tpu_custom_call.1} parent=1 // pred_check_branch
      %69 = sbr.rel (%p67) target = $region37
    $region36: #{tpu_custom_call.1} parent=1 // pred_region
      %70 = vst [vmem:[#allocation3] sm:$0x1] 0.0
    $region37: #{tpu_custom_call.1} parent=1 // pred_fallthru
      _
    %v71 = vld [vmem:[%s64] sm:$0xff]
    %v72 = vld [vmem:[%s58] sm:$0xff]
    %v73 = vld [vmem:[%s2] sm:$0x3f]
    %v74 = vld [vmem:[%s4] sm:$0x1]
    %v76 = vperm.slane %v74, 0
    %vm78 = vcmask 48128
    %v80 = vsel %vm78, %v71, 0
    %vm82 = vcmask 1045504
    %v84 = vsel %vm82, %v73, 0
    %86 = vmatpush.msra.mxu0 0.0
    %87 = vmatpush.msra.mxu0 0.0
    %88 = vmatpush.msra.mxu0 0.0
    %89 = vmatpush.msra.mxu0 0.0
    %90 = vmatpush.msra.mxu0 0.0
    %91 = vmatpush.msra.mxu0 0.0
    %92 = vmatpush.msra.mxu0 0.0
    %93 = vmatpush.msra.mxu0 0.0
    %94 = vmatpush.msra.mxu0 0.0
    %95 = vmatpush.msra.mxu0 0.0
    %96 = vmatpush.msra.mxu0 0.0
    %97 = vmatpush.msra.mxu0 0.0
    %98 = vmatpush.msra.mxu0 0.0
    %99 = vmatpush.msra.mxu0 0.0
    %100 = vmatpush.msra.mxu0 0.0
    %101 = vmatpush.msra.mxu0 %v84
    %102 = vmatmul.f32.gmra.mxu0 %v80
    %v103 = vpop.f32.mrf.mxu0
    %v104 = vadd.f32 %v76, %v103
    %105 = vdwg.mxu0
    %v106 = vtanh.pop %v104
    %v107 = vld [vmem:[%s5] sm:$0x1]
    %v109 = vperm.slane %v107, 0
    %v111 = vmul.f32 %v106, %v109
    %vm112 = vcmask 261120
    %v113 = vsel %vm112, %v111, 0.0
    %114 = vadd.xlane.f32.xlu0 %v113
    %v115 = vpop.xlane.xlu0 %114
    %v116 = vld [vmem:[#allocation2] sm:$0x1]
    %v118 = vperm.slane %v116, 0
    %v120 = vadd.f32 %v115, %v118
    %v121 = vmul.f32 %v106, %v106
    %v122 = vsub.f32 1.0, %v121
    %v123 = vmul.f32 %v122, %v109
    %v124 = vld [vmem:[%s3] sm:$0xff]
    %v125 = vld [vmem:[%s3 + $0x8] sm:$0xff]
    %v126 = vld [vmem:[%s3 + $0x10] sm:$0xff]
    %v127 = vld [vmem:[%s3 + $0x18] sm:$0xff]
    %v129 = vsel %vm112, %v123, 0
    %131 = vmatpush.msra.mxu0 0.0
    %132 = vmatpush.msra.mxu0 0.0
    %133 = vmatpush.msra.mxu0 0.0
    %134 = vmatpush.msra.mxu0 0.0
    %135 = vmatpush.msra.mxu0 0.0
    %136 = vmatpush.msra.mxu0 0.0
    %137 = vmatpush.msra.mxu0 0.0
    %138 = vmatpush.msra.mxu0 0.0
    %139 = vmatpush.msra.mxu0 0.0
    %140 = vmatpush.msra.mxu0 0.0
    %141 = vmatpush.msra.mxu0 0.0
    %142 = vmatpush.msra.mxu0 0.0
    %143 = vmatpush.msra.mxu0 %v127
    %144 = vmatpush.msra.mxu0 %v126
    %145 = vmatpush.msra.mxu0 %v125
    %146 = vmatpush.msra.mxu0 %v124
    %147 = vmatmul.f32.gmra.mxu0 %v129
    %v148 = vpop.f32.mrf.mxu0
    %v149 = vadd.f32 0.0, %v148
    %150 = vdwg.mxu0
    %vm151 = vcmp.gt.f32.partialorder %v72, 0.5
    %v152 = vsel %vm151, 1, 0
    %v153 = vcvt.s32.f32 %v152
    %v154 = vand.u32 2147483647, %v72
    %vm155 = vcmp.lt.f32.partialorder %v154, 0.5
    %v156 = vsel %vm155, 1, 0
    %v157 = vcvt.s32.f32 %v156
    %v158 = vadd.f32 %v153, %v157
    %v159 = vsub.f32 0.1, %v120
    %v160 = vmax.f32 %v159, 0.0
    %v161 = vadd.f32 %v120, 0.1
    %v162 = vmax.f32 %v161, 0.0
    %v163 = vld [vmem:[%s7] sm:$0x3f]
    %v165 = vsel %vm82, %v163, 0
    %167 = vmatpush.msra.mxu0 0.0
    %168 = vmatpush.msra.mxu0 0.0
    %169 = vmatpush.msra.mxu0 0.0
    %170 = vmatpush.msra.mxu0 0.0
    %171 = vmatpush.msra.mxu0 0.0
    %172 = vmatpush.msra.mxu0 0.0
    %173 = vmatpush.msra.mxu0 0.0
    %174 = vmatpush.msra.mxu0 0.0
    %175 = vmatpush.msra.mxu0 0.0
    %176 = vmatpush.msra.mxu0 0.0
    %177 = vmatpush.msra.mxu0 0.0
    %178 = vmatpush.msra.mxu0 0.0
    %179 = vmatpush.msra.mxu0 0.0
    %180 = vmatpush.msra.mxu0 0.0
    %181 = vmatpush.msra.mxu0 0.0
    %182 = vmatpush.msra.mxu0 %v165
    %183 = vmatmul.f32.gmra.mxu0 %v80
    %v184 = vpop.f32.mrf.mxu0
    %v185 = vadd.f32 0.0, %v184
    %186 = vdwg.mxu0
    %v187 = vmul.f32 %v149, %v185
    %vm188 = vcmask 31744
    %v189 = vsel %vm188, %v187, 0.0
    %190 = vadd.xlane.f32.xlu0 %v189
    %v191 = vpop.xlane.xlu0 %190
    %v192 = vand.u32 2147483647, %v120
    %v193 = vmul.f32 %v192, 0.1
    %v194 = vsub.f32 0.0, %v193
    %v195 = vsub.f32 %v194, %v191
    %v196 = vmax.f32 %v195, 0.0
    %v197 = vmul.f32 %v149, %v149
    %v198 = vsel %vm188, %v197, 0.0
    %199 = vadd.xlane.f32.xlu0 %v198
    %v200 = vpop.xlane.xlu0 %199
    %v201 = vmul.f32 %v160, %v153
    %vm202 = vcmask 7168
    %v203 = vsel %vm202, %v201, 0.0
    %204 = vadd.xlane.f32.xlu0 %v203
    %v205 = vpop.xlane.xlu0 %204
    %v206 = vrot.slane %v205, 4
    %v207 = vadd.f32 %v205, %v206
    %v208 = vrot.slane %v207, 2
    %v209 = vadd.f32 %v207, %v208
    %v210 = vrot.slane %v209, 1
    %v211 = vadd.f32 %v209, %v210
    %s212 = vtos %v211
    %v213 = vmul.f32 %v162, %v157
    %v214 = vsel %vm202, %v213, 0.0
    %215 = vadd.xlane.f32.xlu0 %v214
    %v216 = vpop.xlane.xlu0 %215
    %v217 = vrot.slane %v216, 4
    %v218 = vadd.f32 %v216, %v217
    %v219 = vrot.slane %v218, 2
    %v220 = vadd.f32 %v218, %v219
    %v221 = vrot.slane %v220, 1
    %v222 = vadd.f32 %v220, %v221
    %s223 = vtos %v222
    %v224 = vmul.f32 %v196, %v153
    %v225 = vsel %vm202, %v224, 0.0
    %226 = vadd.xlane.f32.xlu0 %v225
    %v227 = vpop.xlane.xlu0 %226
    %v228 = vrot.slane %v227, 4
    %v229 = vadd.f32 %v227, %v228
    %v230 = vrot.slane %v229, 2
    %v231 = vadd.f32 %v229, %v230
    %v232 = vrot.slane %v231, 1
    %v233 = vadd.f32 %v231, %v232
    %s234 = vtos %v233
    %v235 = vmul.f32 %v200, %v158
    %v236 = vsel %vm202, %v235, 0.0
    %237 = vadd.xlane.f32.xlu0 %v236
    %v238 = vpop.xlane.xlu0 %237
    %v239 = vrot.slane %v238, 4
    %v240 = vadd.f32 %v238, %v239
    %v241 = vrot.slane %v240, 2
    %v242 = vadd.f32 %v240, %v241
    %v243 = vrot.slane %v242, 1
    %v244 = vadd.f32 %v242, %v243
    %s245 = vtos %v244
    %v246 = vsel %vm202, %v153, 0.0
    %247 = vadd.xlane.f32.xlu0 %v246
    %v248 = vpop.xlane.xlu0 %247
    %v249 = vrot.slane %v248, 4
    %v250 = vadd.f32 %v248, %v249
    %v251 = vrot.slane %v250, 2
    %v252 = vadd.f32 %v250, %v251
    %v253 = vrot.slane %v252, 1
    %v254 = vadd.f32 %v252, %v253
    %s255 = vtos %v254
    %v256 = vsel %vm202, %v157, 0.0
    %257 = vadd.xlane.f32.xlu0 %v256
    %v258 = vpop.xlane.xlu0 %257
    %v259 = vrot.slane %v258, 4
    %v260 = vadd.f32 %v258, %v259
    %v261 = vrot.slane %v260, 2
    %v262 = vadd.f32 %v260, %v261
    %v263 = vrot.slane %v262, 1
    %v264 = vadd.f32 %v262, %v263
    %s265 = vtos %v264
    %v266 = vlaneseq
    %v267 = vand.u32 %v266, 127
    %vm268 = vcmp.eq.s32.totalorder %v267, 0
    %v269 = vstv %s212
    %v270 = vsel %vm268, %v269, 0.0
    %vm271 = vcmp.eq.s32.totalorder %v267, 1
    %v272 = vstv %s223
    %v273 = vsel %vm271, %v272, 0.0
    %v274 = vadd.f32 %v270, %v273
    %vm275 = vcmp.eq.s32.totalorder %v267, 2
    %v276 = vstv %s234
    %v277 = vsel %vm275, %v276, 0.0
    %v278 = vadd.f32 %v274, %v277
    %vm279 = vcmp.eq.s32.totalorder %v267, 3
    %v280 = vstv %s245
    %v281 = vsel %vm279, %v280, 0.0
    %v282 = vadd.f32 %v278, %v281
    %vm283 = vcmp.eq.s32.totalorder %v267, 4
    %v284 = vstv %s255
    %v285 = vsel %vm283, %v284, 0.0
    %v286 = vadd.f32 %v282, %v285
    %vm287 = vcmp.eq.s32.totalorder %v267, 5
    %v288 = vstv %s265
    %v289 = vsel %vm287, %v288, 0.0
    %v290 = vadd.f32 %v286, %v289
    %v291 = vld [vmem:[#allocation3] sm:$0x1]
    %v292 = vadd.f32 %v291, %v290
    %293 = vst [vmem:[#allocation3] sm:$0x1] %v292
    // Predicated region
    $region38: #{tpu_custom_call.1} parent=1 // pred_check
      _
    $region39: #{tpu_custom_call.1} parent=1 // pred_check_branch
      %295 = sbr.rel (0) target = $region41
    $region40: #{tpu_custom_call.1} parent=1 // pred_region
      %297 = vsyncadd [#allocation4], 0
      %s299 = sshll.u32 [#allocation3], 4
      %s300 = int_to_ptr.vmem [resolvable:$true] %s299
      %s301 = sshll.u32 %s8, 4
      %s302 = int_to_ptr.hbm [resolvable:$true] %s301
      %304 = dma.vmem_to_hbm [thread:$0]  %s300, 16, %s302, [#allocation4]
    $region41: #{tpu_custom_call.1} parent=1 // pred_fallthru
      _
    // Predicated region
    $region42: #{tpu_custom_call.1} parent=1 // pred_check
      _
    $region43: #{tpu_custom_call.1} parent=1 // pred_check_branch
      %306 = sbr.rel (0) target = $region45
    $region44: #{tpu_custom_call.1} parent=1 // pred_region
      %308 = dma.done [#allocation4], 16
    $region45: #{tpu_custom_call.1} parent=1 // pred_fallthru
      _
    %309 = vsyncpa [#allocation4], 1

</llo_original>
